<compile_context>
chip_gen: v5e
topology: v5e:2x2
jax: 0.10.0
libtpu: 0.0.40
codegen_flags: <defaults>
</compile_context>

<pallas_src>
from functools import partial

import numpy as np
import jax
import jax.numpy as jnp
from jax.experimental import pallas as pl
from jax.experimental.pallas import tpu as pltpu


def _round_up(n, m):
    return ((n + m - 1) // m) * m


def _pick_tile(n, base, cap):
    """Largest multiple of `base` that divides n and is <= cap; else n itself."""
    t = (min(cap, n) // base) * base
    while t >= base:
        if n % t == 0:
            return t
        t -= base
    return n


# ---------------------------------------------------------------------------
# Kernels
# ---------------------------------------------------------------------------
def dgf_attn_kernel(pooled_ref, w1_ref, w2_ref, b2_ref, attn_ref, *, temperature):
    # Squeeze-excite style gate (attn_fn is not given in the source):
    #   pooled -> fc -> relu -> fc(+bias) -> softmax(logits / temperature)
    h = jnp.dot(pooled_ref[...], w1_ref[...], preferred_element_type=jnp.float32)
    h = jnp.maximum(h, 0.0)
    logits = jnp.dot(h, w2_ref[...], preferred_element_type=jnp.float32)
    logits = (logits + b2_ref[...]) * (1.0 / temperature)
    m = jnp.max(logits, axis=-1, keepdims=True)
    e = jnp.exp(logits - m)
    attn_ref[...] = e / jnp.sum(e, axis=-1, keepdims=True)


def dgf_spectral_kernel(attn_ref, xr_ref, xi_ref, wre_ref, wim_ref,
                        yr_ref, yi_ref, *, K):
    # attn_ref: (B, K) f32 scalar-prefetch operand living in SMEM.
    b = pl.program_id(2)                        # batch is the innermost grid axis
    xr = xr_ref[...]                            # (tc, tf) f32
    xi = xi_ref[...]
    # Aggregate the K complex filter banks with scalar-broadcast FMAs on the
    # VPU (K is tiny; a (B,K)x(K,N) MXU matmul would be >90% padding).
    agg_re = attn_ref[b, 0] * wre_ref[0].astype(jnp.float32)
    agg_im = attn_ref[b, 0] * wim_ref[0].astype(jnp.float32)
    for k in range(1, K):
        a_k = attn_ref[b, k]
        agg_re = agg_re + a_k * wre_ref[k].astype(jnp.float32)
        agg_im = agg_im + a_k * wim_ref[k].astype(jnp.float32)
    # Complex elementwise multiply in the frequency domain.
    yr_ref[...] = xr * agg_re - xi * agg_im
    yi_ref[...] = xr * agg_im + xi * agg_re


# ---------------------------------------------------------------------------
# Wrappers
# ---------------------------------------------------------------------------
def _attn_gate(pooled, w1, w2, b2, temperature):
    B = pooled.shape[0]
    K = w2.shape[1]
    vmem = pl.BlockSpec(memory_space=pltpu.MemorySpace.VMEM)
    return pl.pallas_call(
        partial(dgf_attn_kernel, temperature=float(temperature)),
        out_shape=jax.ShapeDtypeStruct((B, K), jnp.float32),
        in_specs=[vmem, vmem, vmem, vmem],
        out_specs=vmem,
    )(pooled, w1, w2, b2)


def dgf_forward(x, params, *, temperature=34.0):
    x = x.astype(jnp.float32)
    B, C, T = x.shape
    F = T // 2 + 1

    cw = params["complex_weight"]                       # (K, C, F, 2) float32
    K = cw.shape[0]
    # TODO(synk): the F.interpolate bilinear resize of complex_weight (used when
    # the stored frequency dim != T//2+1) is not implemented; we require a match.
    assert cw.shape[1] == C and cw.shape[2] == F

    # TODO(synk): torch.fft.rfft / irfft have no Pallas primitive; done in JAX.
    xf = jnp.fft.rfft(x, axis=-1, norm="ortho")         # (B, C, F) complex64

    # ---- attention gate: global average pool over T derived from the DC bin
    # (ortho norm => mean_t(x) = Re(X[0]) / sqrt(T)); avoids re-reading x.
    pooled = jnp.real(xf[..., 0]) * (1.0 / np.sqrt(T))  # (B, C)
    attn = _attn_gate(pooled,
                      params["w1"].astype(jnp.float32),
                      params["w2"].astype(jnp.float32),
                      params["b2"].astype(jnp.float32),
                      temperature)                      # (B, K) f32

    # ---- lane-dense spectral layout: pad F up to a multiple of 128.
    F_pad = _round_up(F, 128)
    pad = ((0, 0), (0, 0), (0, F_pad - F))
    xr = jnp.pad(jnp.real(xf), pad)                     # (B, C, F_pad) f32
    xi = jnp.pad(jnp.imag(xf), pad)
    # Filter banks dominate HBM traffic -> store as bf16, upcast in-kernel.
    # (In a real model they would be pre-packed once, outside the hot path.)
    wre = jnp.pad(cw[..., 0], pad).astype(jnp.bfloat16)  # (K, C, F_pad)
    wim = jnp.pad(cw[..., 1], pad).astype(jnp.bfloat16)

    # ---- tiling: sublane-aligned C tile, lane-dense 128-aligned F tile.
    # Caps keep the double-buffered working set well under v7x's 64 MiB VMEM.
    tc = _pick_tile(C, 8, 64)
    tf = _pick_tile(F_pad, 128, 1024)
    grid = (C // tc, F_pad // tf, B)   # B innermost: weight tiles reused across batch

    yr, yi = pl.pallas_call(
        partial(dgf_spectral_kernel, K=K),
        out_shape=(jax.ShapeDtypeStruct((B, C, F_pad), jnp.float32),
                   jax.ShapeDtypeStruct((B, C, F_pad), jnp.float32)),
        grid_spec=pltpu.PrefetchScalarGridSpec(
            num_scalar_prefetch=1,                      # attn (B, K) -> SMEM
            grid=grid,
            in_specs=[
                pl.BlockSpec((None, tc, tf), lambda ci, fi, b, a: (b, ci, fi)),
                pl.BlockSpec((None, tc, tf), lambda ci, fi, b, a: (b, ci, fi)),
                pl.BlockSpec((K, tc, tf), lambda ci, fi, b, a: (0, ci, fi)),
                pl.BlockSpec((K, tc, tf), lambda ci, fi, b, a: (0, ci, fi)),
            ],
            out_specs=(
                pl.BlockSpec((None, tc, tf), lambda ci, fi, b, a: (b, ci, fi)),
                pl.BlockSpec((None, tc, tf), lambda ci, fi, b, a: (b, ci, fi)),
            ),
        ),
        compiler_params=pltpu.CompilerParams(
            dimension_semantics=("parallel", "parallel", "arbitrary"),
            vmem_limit_bytes=32 * 1024 * 1024,          # above v5e's 16 MiB default
        ),
    )(attn, xr, xi, wre, wim)

    yf = jax.lax.complex(yr[..., :F], yi[..., :F])
    return jnp.fft.irfft(yf, n=T, axis=-1, norm="ortho").astype(jnp.float32)


# ---------------------------------------------------------------------------
# Pure-JAX reference (same attn_fn assumption; mirrors bf16 filter storage)
# ---------------------------------------------------------------------------
def dgf_reference(x, params, temperature):
    B, C, T = x.shape
    pooled = jnp.mean(x, axis=-1)
    h = jnp.maximum(jnp.dot(pooled, params["w1"], precision="highest"), 0.0)
    logits = (jnp.dot(h, params["w2"], precision="highest") + params["b2"]) / temperature
    attn = jax.nn.softmax(logits, axis=-1)
    # mirror the kernel's bf16 filter-bank storage so the check isolates the kernel
    cw = params["complex_weight"].astype(jnp.bfloat16).astype(jnp.float32)
    xf = jnp.fft.rfft(x, axis=-1, norm="ortho")
    agg = jnp.sum(attn[:, :, None, None, None] * cw[None], axis=1)   # (B, C, F, 2)
    agg_c = agg[..., 0] + 1j * agg[..., 1]
    return jnp.fft.irfft(xf * agg_c, n=T, axis=-1, norm="ortho")


if __name__ == "__main__":
    B, C, T, K = 2, 16, 16, 8
    ratios, temperature = 0.25, 34.0
    H = max(1, int(C * ratios))
    F = T // 2 + 1

    key = jax.random.PRNGKey(0)
    k1, k2, k3, k4, k5 = jax.random.split(key, 5)
    params = {
        # matches nn.Parameter(randn(K, dim, T//2+1, 2) * 0.02) / trunc_normal(std=0.02)
        "complex_weight": jax.random.normal(k1, (K, C, F, 2), jnp.float32) * 0.02,
        "w1": jax.random.normal(k2, (C, H), jnp.float32) * 0.1,
        "w2": jax.random.normal(k3, (H, K), jnp.float32) * 0.1,
        "b2": jax.random.normal(k4, (1, K), jnp.float32) * 0.1,
    }
    x = jax.random.normal(k5, (B, C, T), jnp.float32)

    fwd = jax.jit(partial(dgf_forward, temperature=temperature))
    y = fwd(x, params)
    jax.block_until_ready(y)

    y_ref = dgf_reference(x, params, temperature)
    assert y.shape == (B, C, T)
    np.testing.assert_allclose(np.asarray(y), np.asarray(y_ref),
                               atol=1e-4, rtol=1e-4)
    print("KERNEL_OK")
</pallas_src>

<mosaic_0001>
module attributes {stable_mosaic.version = 11 : i64} {
  func.func @dgf_attn_kernel(%arg0: memref<2x16xf32, #tpu.memory_space<vmem>>, %arg1: memref<16x4xf32, #tpu.memory_space<vmem>>, %arg2: memref<4x8xf32, #tpu.memory_space<vmem>>, %arg3: memref<1x8xf32, #tpu.memory_space<vmem>>, %arg4: memref<2x8xf32, #tpu.memory_space<vmem>>) attributes {dimension_semantics = [], scalar_prefetch = 0 : i64, scratch_operands = 0 : i64, tpu.core_type = #tpu.core_type<tc>} {
    %c0 = arith.constant 0 : index
    %c0_0 = arith.constant 0 : index
    %0 = vector.load %arg0[%c0, %c0_0] : memref<2x16xf32, #tpu.memory_space<vmem>>, vector<2x16xf32>
    %c0_1 = arith.constant 0 : index
    %c0_2 = arith.constant 0 : index
    %1 = vector.load %arg1[%c0_1, %c0_2] : memref<16x4xf32, #tpu.memory_space<vmem>>, vector<16x4xf32>
    %cst = arith.constant dense<0.000000e+00> : vector<2x4xf32>
    %2 = tpu.matmul %0, %1, %cst {dimension_numbers = #tpu.dot_dimension_numbers<[1], [0], [0], [1], [0, 0, 1, 1], [], []>} : vector<2x16xf32>, vector<16x4xf32>, vector<2x4xf32> -> vector<2x4xf32>
    %cst_3 = arith.constant 0.000000e+00 : f32
    %3 = vector.broadcast %cst_3 : f32 to vector<2x4xf32>
    %4 = arith.maximumf %2, %3 : vector<2x4xf32>
    %c0_4 = arith.constant 0 : index
    %c0_5 = arith.constant 0 : index
    %5 = vector.load %arg2[%c0_4, %c0_5] : memref<4x8xf32, #tpu.memory_space<vmem>>, vector<4x8xf32>
    %cst_6 = arith.constant dense<0.000000e+00> : vector<2x8xf32>
    %6 = tpu.matmul %4, %5, %cst_6 {dimension_numbers = #tpu.dot_dimension_numbers<[1], [0], [0], [1], [0, 0, 1, 1], [], []>} : vector<2x4xf32>, vector<4x8xf32>, vector<2x8xf32> -> vector<2x8xf32>
    %c0_7 = arith.constant 0 : index
    %c0_8 = arith.constant 0 : index
    %7 = vector.load %arg3[%c0_7, %c0_8] : memref<1x8xf32, #tpu.memory_space<vmem>>, vector<1x8xf32>
    %8 = vector.broadcast %7 : vector<1x8xf32> to vector<2x8xf32>
    %9 = arith.addf %6, %8 : vector<2x8xf32>
    %cst_9 = arith.constant 0.0294117648 : f32
    %10 = vector.broadcast %cst_9 : f32 to vector<2x8xf32>
    %11 = arith.mulf %9, %10 : vector<2x8xf32>
    %cst_10 = arith.constant dense<0xFF800000> : vector<2xf32>
    %12 = vector.multi_reduction <maximumf>, %11, %cst_10 [1] : vector<2x8xf32> to vector<2xf32>
    %13 = vector.shape_cast %12 : vector<2xf32> to vector<2x1xf32>
    %14 = vector.broadcast %13 : vector<2x1xf32> to vector<2x8xf32>
    %15 = arith.subf %11, %14 : vector<2x8xf32>
    %16 = math.exp %15 : vector<2x8xf32>
    %cst_11 = arith.constant dense<0.000000e+00> : vector<2xf32>
    %17 = vector.multi_reduction <add>, %16, %cst_11 [1] : vector<2x8xf32> to vector<2xf32>
    %18 = vector.shape_cast %17 : vector<2xf32> to vector<2x1xf32>
    %19 = vector.broadcast %18 : vector<2x1xf32> to vector<2x8xf32>
    %20 = arith.divf %16, %19 : vector<2x8xf32>
    %c0_12 = arith.constant 0 : index
    %c0_13 = arith.constant 0 : index
    %21 = vector.load %arg4[%c0_12, %c0_13] : memref<2x8xf32, #tpu.memory_space<vmem>>, vector<2x8xf32>
    tpu.vector_store %arg4[%c0_12, %c0_13], %20 {strides = array<i32>} : memref<2x8xf32, #tpu.memory_space<vmem>>, vector<2x8xf32>,
    return
  }
}

module attributes {stable_mosaic.version = 11 : i64} {
  func.func @dgf_spectral_kernel(%arg0: i32, %arg1: i32, %arg2: i32, %arg3: memref<2x8xf32, #tpu.memory_space<smem>>, %arg4: memref<1x16x128xf32, #tpu.memory_space<vmem>>, %arg5: memref<1x16x128xf32, #tpu.memory_space<vmem>>, %arg6: memref<8x16x128xbf16, #tpu.memory_space<vmem>>, %arg7: memref<8x16x128xbf16, #tpu.memory_space<vmem>>, %arg8: memref<1x16x128xf32, #tpu.memory_space<vmem>>, %arg9: memref<1x16x128xf32, #tpu.memory_space<vmem>>) attributes {dimension_semantics = [#tpu.dimension_semantics<parallel>, #tpu.dimension_semantics<parallel>, #tpu.dimension_semantics<arbitrary>], iteration_bounds = array<i64: 1, 1, 2>, scalar_prefetch = 1 : i64, scratch_operands = 0 : i64, tpu.core_type = #tpu.core_type<tc>, window_params = [{transform_indices = @transform_0, window_bounds = array<i64: 1, 16, 128>}, {transform_indices = @transform_1, window_bounds = array<i64: 1, 16, 128>}, {transform_indices = @transform_2, window_bounds = array<i64: 8, 16, 128>}, {transform_indices = @transform_3, window_bounds = array<i64: 8, 16, 128>}, {transform_indices = @transform_4, window_bounds = array<i64: 1, 16, 128>}, {transform_indices = @transform_5, window_bounds = array<i64: 1, 16, 128>}]} {
    %c0 = arith.constant 0 : index
    %c0_0 = arith.constant 0 : index
    %c0_1 = arith.constant 0 : index
    %0 = vector.load %arg4[%c0, %c0_0, %c0_1] : memref<1x16x128xf32, #tpu.memory_space<vmem>>, vector<1x16x128xf32>
    %1 = vector.shape_cast %0 : vector<1x16x128xf32> to vector<16x128xf32>
    %c0_2 = arith.constant 0 : index
    %c0_3 = arith.constant 0 : index
    %c0_4 = arith.constant 0 : index
    %2 = vector.load %arg5[%c0_2, %c0_3, %c0_4] : memref<1x16x128xf32, #tpu.memory_space<vmem>>, vector<1x16x128xf32>
    %3 = vector.shape_cast %2 : vector<1x16x128xf32> to vector<16x128xf32>
    %4 = arith.index_cast %arg2 : i32 to index
    %c0_5 = arith.constant 0 : index
    %5 = memref.load %arg3[%4, %c0_5] : memref<2x8xf32, #tpu.memory_space<smem>>
    %c0_6 = arith.constant 0 : index
    %c0_7 = arith.constant 0 : index
    %c0_8 = arith.constant 0 : index
    %6 = vector.load %arg6[%c0_6, %c0_7, %c0_8] : memref<8x16x128xbf16, #tpu.memory_space<vmem>>, vector<1x16x128xbf16>
    %7 = vector.shape_cast %6 : vector<1x16x128xbf16> to vector<16x128xbf16>
    %8 = arith.extf %7 : vector<16x128xbf16> to vector<16x128xf32>
    %9 = vector.broadcast %5 : f32 to vector<16x128xf32>
    %10 = arith.mulf %9, %8 : vector<16x128xf32>
    %11 = arith.index_cast %arg2 : i32 to index
    %c0_9 = arith.constant 0 : index
    %12 = memref.load %arg3[%11, %c0_9] : memref<2x8xf32, #tpu.memory_space<smem>>
    %c0_10 = arith.constant 0 : index
    %c0_11 = arith.constant 0 : index
    %c0_12 = arith.constant 0 : index
    %13 = vector.load %arg7[%c0_10, %c0_11, %c0_12] : memref<8x16x128xbf16, #tpu.memory_space<vmem>>, vector<1x16x128xbf16>
    %14 = vector.shape_cast %13 : vector<1x16x128xbf16> to vector<16x128xbf16>
    %15 = arith.extf %14 : vector<16x128xbf16> to vector<16x128xf32>
    %16 = vector.broadcast %12 : f32 to vector<16x128xf32>
    %17 = arith.mulf %16, %15 : vector<16x128xf32>
    %18 = arith.index_cast %arg2 : i32 to index
    %c1 = arith.constant 1 : index
    %19 = memref.load %arg3[%18, %c1] : memref<2x8xf32, #tpu.memory_space<smem>>
    %c1_13 = arith.constant 1 : index
    %c0_14 = arith.constant 0 : index
    %c0_15 = arith.constant 0 : index
    %20 = vector.load %arg6[%c1_13, %c0_14, %c0_15] : memref<8x16x128xbf16, #tpu.memory_space<vmem>>, vector<1x16x128xbf16>
    %21 = vector.shape_cast %20 : vector<1x16x128xbf16> to vector<16x128xbf16>
    %22 = arith.extf %21 : vector<16x128xbf16> to vector<16x128xf32>
    %23 = vector.broadcast %19 : f32 to vector<16x128xf32>
    %24 = arith.mulf %23, %22 : vector<16x128xf32>
    %25 = arith.addf %10, %24 : vector<16x128xf32>
    %c1_16 = arith.constant 1 : index
    %c0_17 = arith.constant 0 : index
    %c0_18 = arith.constant 0 : index
    %26 = vector.load %arg7[%c1_16, %c0_17, %c0_18] : memref<8x16x128xbf16, #tpu.memory_space<vmem>>, vector<1x16x128xbf16>
    %27 = vector.shape_cast %26 : vector<1x16x128xbf16> to vector<16x128xbf16>
    %28 = arith.extf %27 : vector<16x128xbf16> to vector<16x128xf32>
    %29 = vector.broadcast %19 : f32 to vector<16x128xf32>
    %30 = arith.mulf %29, %28 : vector<16x128xf32>
    %31 = arith.addf %17, %30 : vector<16x128xf32>
    %32 = arith.index_cast %arg2 : i32 to index
    %c2 = arith.constant 2 : index
    %33 = memref.load %arg3[%32, %c2] : memref<2x8xf32, #tpu.memory_space<smem>>
    %c2_19 = arith.constant 2 : index
    %c0_20 = arith.constant 0 : index
    %c0_21 = arith.constant 0 : index
    %34 = vector.load %arg6[%c2_19, %c0_20, %c0_21] : memref<8x16x128xbf16, #tpu.memory_space<vmem>>, vector<1x16x128xbf16>
    %35 = vector.shape_cast %34 : vector<1x16x128xbf16> to vector<16x128xbf16>
    %36 = arith.extf %35 : vector<16x128xbf16> to vector<16x128xf32>
    %37 = vector.broadcast %33 : f32 to vector<16x128xf32>
    %38 = arith.mulf %37, %36 : vector<16x128xf32>
    %39 = arith.addf %25, %38 : vector<16x128xf32>
    %c2_22 = arith.constant 2 : index
    %c0_23 = arith.constant 0 : index
    %c0_24 = arith.constant 0 : index
    %40 = vector.load %arg7[%c2_22, %c0_23, %c0_24] : memref<8x16x128xbf16, #tpu.memory_space<vmem>>, vector<1x16x128xbf16>
    %41 = vector.shape_cast %40 : vector<1x16x128xbf16> to vector<16x128xbf16>
    %42 = arith.extf %41 : vector<16x128xbf16> to vector<16x128xf32>
    %43 = vector.broadcast %33 : f32 to vector<16x128xf32>
    %44 = arith.mulf %43, %42 : vector<16x128xf32>
    %45 = arith.addf %31, %44 : vector<16x128xf32>
    %46 = arith.index_cast %arg2 : i32 to index
    %c3 = arith.constant 3 : index
    %47 = memref.load %arg3[%46, %c3] : memref<2x8xf32, #tpu.memory_space<smem>>
    %c3_25 = arith.constant 3 : index
    %c0_26 = arith.constant 0 : index
    %c0_27 = arith.constant 0 : index
    %48 = vector.load %arg6[%c3_25, %c0_26, %c0_27] : memref<8x16x128xbf16, #tpu.memory_space<vmem>>, vector<1x16x128xbf16>
    %49 = vector.shape_cast %48 : vector<1x16x128xbf16> to vector<16x128xbf16>
    %50 = arith.extf %49 : vector<16x128xbf16> to vector<16x128xf32>
    %51 = vector.broadcast %47 : f32 to vector<16x128xf32>
    %52 = arith.mulf %51, %50 : vector<16x128xf32>
    %53 = arith.addf %39, %52 : vector<16x128xf32>
    %c3_28 = arith.constant 3 : index
    %c0_29 = arith.constant 0 : index
    %c0_30 = arith.constant 0 : index
    %54 = vector.load %arg7[%c3_28, %c0_29, %c0_30] : memref<8x16x128xbf16, #tpu.memory_space<vmem>>, vector<1x16x128xbf16>
    %55 = vector.shape_cast %54 : vector<1x16x128xbf16> to vector<16x128xbf16>
    %56 = arith.extf %55 : vector<16x128xbf16> to vector<16x128xf32>
    %57 = vector.broadcast %47 : f32 to vector<16x128xf32>
    %58 = arith.mulf %57, %56 : vector<16x128xf32>
    %59 = arith.addf %45, %58 : vector<16x128xf32>
    %60 = arith.index_cast %arg2 : i32 to index
    %c4 = arith.constant 4 : index
    %61 = memref.load %arg3[%60, %c4] : memref<2x8xf32, #tpu.memory_space<smem>>
    %c4_31 = arith.constant 4 : index
    %c0_32 = arith.constant 0 : index
    %c0_33 = arith.constant 0 : index
    %62 = vector.load %arg6[%c4_31, %c0_32, %c0_33] : memref<8x16x128xbf16, #tpu.memory_space<vmem>>, vector<1x16x128xbf16>
    %63 = vector.shape_cast %62 : vector<1x16x128xbf16> to vector<16x128xbf16>
    %64 = arith.extf %63 : vector<16x128xbf16> to vector<16x128xf32>
    %65 = vector.broadcast %61 : f32 to vector<16x128xf32>
    %66 = arith.mulf %65, %64 : vector<16x128xf32>
    %67 = arith.addf %53, %66 : vector<16x128xf32>
    %c4_34 = arith.constant 4 : index
    %c0_35 = arith.constant 0 : index
    %c0_36 = arith.constant 0 : index
    %68 = vector.load %arg7[%c4_34, %c0_35, %c0_36] : memref<8x16x128xbf16, #tpu.memory_space<vmem>>, vector<1x16x128xbf16>
    %69 = vector.shape_cast %68 : vector<1x16x128xbf16> to vector<16x128xbf16>
    %70 = arith.extf %69 : vector<16x128xbf16> to vector<16x128xf32>
    %71 = vector.broadcast %61 : f32 to vector<16x128xf32>
    %72 = arith.mulf %71, %70 : vector<16x128xf32>
    %73 = arith.addf %59, %72 : vector<16x128xf32>
    %74 = arith.index_cast %arg2 : i32 to index
    %c5 = arith.constant 5 : index
    %75 = memref.load %arg3[%74, %c5] : memref<2x8xf32, #tpu.memory_space<smem>>
    %c5_37 = arith.constant 5 : index
    %c0_38 = arith.constant 0 : index
    %c0_39 = arith.constant 0 : index
    %76 = vector.load %arg6[%c5_37, %c0_38, %c0_39] : memref<8x16x128xbf16, #tpu.memory_space<vmem>>, vector<1x16x128xbf16>
    %77 = vector.shape_cast %76 : vector<1x16x128xbf16> to vector<16x128xbf16>
    %78 = arith.extf %77 : vector<16x128xbf16> to vector<16x128xf32>
    %79 = vector.broadcast %75 : f32 to vector<16x128xf32>
    %80 = arith.mulf %79, %78 : vector<16x128xf32>
    %81 = arith.addf %67, %80 : vector<16x128xf32>
    %c5_40 = arith.constant 5 : index
    %c0_41 = arith.constant 0 : index
    %c0_42 = arith.constant 0 : index
    %82 = vector.load %arg7[%c5_40, %c0_41, %c0_42] : memref<8x16x128xbf16, #tpu.memory_space<vmem>>, vector<1x16x128xbf16>
    %83 = vector.shape_cast %82 : vector<1x16x128xbf16> to vector<16x128xbf16>
    %84 = arith.extf %83 : vector<16x128xbf16> to vector<16x128xf32>
    %85 = vector.broadcast %75 : f32 to vector<16x128xf32>
    %86 = arith.mulf %85, %84 : vector<16x128xf32>
    %87 = arith.addf %73, %86 : vector<16x128xf32>
    %88 = arith.index_cast %arg2 : i32 to index
    %c6 = arith.constant 6 : index
    %89 = memref.load %arg3[%88, %c6] : memref<2x8xf32, #tpu.memory_space<smem>>
    %c6_43 = arith.constant 6 : index
    %c0_44 = arith.constant 0 : index
    %c0_45 = arith.constant 0 : index
    %90 = vector.load %arg6[%c6_43, %c0_44, %c0_45] : memref<8x16x128xbf16, #tpu.memory_space<vmem>>, vector<1x16x128xbf16>
    %91 = vector.shape_cast %90 : vector<1x16x128xbf16> to vector<16x128xbf16>
    %92 = arith.extf %91 : vector<16x128xbf16> to vector<16x128xf32>
    %93 = vector.broadcast %89 : f32 to vector<16x128xf32>
    %94 = arith.mulf %93, %92 : vector<16x128xf32>
    %95 = arith.addf %81, %94 : vector<16x128xf32>
    %c6_46 = arith.constant 6 : index
    %c0_47 = arith.constant 0 : index
    %c0_48 = arith.constant 0 : index
    %96 = vector.load %arg7[%c6_46, %c0_47, %c0_48] : memref<8x16x128xbf16, #tpu.memory_space<vmem>>, vector<1x16x128xbf16>
    %97 = vector.shape_cast %96 : vector<1x16x128xbf16> to vector<16x128xbf16>
    %98 = arith.extf %97 : vector<16x128xbf16> to vector<16x128xf32>
    %99 = vector.broadcast %89 : f32 to vector<16x128xf32>
    %100 = arith.mulf %99, %98 : vector<16x128xf32>
    %101 = arith.addf %87, %100 : vector<16x128xf32>
    %102 = arith.index_cast %arg2 : i32 to index
    %c7 = arith.constant 7 : index
    %103 = memref.load %arg3[%102, %c7] : memref<2x8xf32, #tpu.memory_space<smem>>
    %c7_49 = arith.constant 7 : index
    %c0_50 = arith.constant 0 : index
    %c0_51 = arith.constant 0 : index
    %104 = vector.load %arg6[%c7_49, %c0_50, %c0_51] : memref<8x16x128xbf16, #tpu.memory_space<vmem>>, vector<1x16x128xbf16>
    %105 = vector.shape_cast %104 : vector<1x16x128xbf16> to vector<16x128xbf16>
    %106 = arith.extf %105 : vector<16x128xbf16> to vector<16x128xf32>
    %107 = vector.broadcast %103 : f32 to vector<16x128xf32>
    %108 = arith.mulf %107, %106 : vector<16x128xf32>
    %109 = arith.addf %95, %108 : vector<16x128xf32>
    %c7_52 = arith.constant 7 : index
    %c0_53 = arith.constant 0 : index
    %c0_54 = arith.constant 0 : index
    %110 = vector.load %arg7[%c7_52, %c0_53, %c0_54] : memref<8x16x128xbf16, #tpu.memory_space<vmem>>, vector<1x16x128xbf16>
    %111 = vector.shape_cast %110 : vector<1x16x128xbf16> to vector<16x128xbf16>
    %112 = arith.extf %111 : vector<16x128xbf16> to vector<16x128xf32>
    %113 = vector.broadcast %103 : f32 to vector<16x128xf32>
    %114 = arith.mulf %113, %112 : vector<16x128xf32>
    %115 = arith.addf %101, %114 : vector<16x128xf32>
    %116 = arith.mulf %1, %109 : vector<16x128xf32>
    %117 = arith.mulf %3, %115 : vector<16x128xf32>
    %118 = arith.subf %116, %117 : vector<16x128xf32>
    %c0_55 = arith.constant 0 : index
    %c0_56 = arith.constant 0 : index
    %c0_57 = arith.constant 0 : index
    %119 = vector.load %arg8[%c0_55, %c0_56, %c0_57] : memref<1x16x128xf32, #tpu.memory_space<vmem>>, vector<1x16x128xf32>
    %120 = vector.shape_cast %119 : vector<1x16x128xf32> to vector<16x128xf32>
    %121 = vector.shape_cast %118 : vector<16x128xf32> to vector<1x16x128xf32>
    tpu.vector_store %arg8[%c0_55, %c0_56, %c0_57], %121 {strides = array<i32>} : memref<1x16x128xf32, #tpu.memory_space<vmem>>, vector<1x16x128xf32>,
    %122 = arith.mulf %1, %115 : vector<16x128xf32>
    %123 = arith.mulf %3, %109 : vector<16x128xf32>
    %124 = arith.addf %122, %123 : vector<16x128xf32>
    %c0_58 = arith.constant 0 : index
    %c0_59 = arith.constant 0 : index
    %c0_60 = arith.constant 0 : index
    %125 = vector.load %arg9[%c0_58, %c0_59, %c0_60] : memref<1x16x128xf32, #tpu.memory_space<vmem>>, vector<1x16x128xf32>
    %126 = vector.shape_cast %125 : vector<1x16x128xf32> to vector<16x128xf32>
    %127 = vector.shape_cast %124 : vector<16x128xf32> to vector<1x16x128xf32>
    tpu.vector_store %arg9[%c0_58, %c0_59, %c0_60], %127 {strides = array<i32>} : memref<1x16x128xf32, #tpu.memory_space<vmem>>, vector<1x16x128xf32>,
    return
  }
  func.func @transform_0(%arg0: i32, %arg1: i32, %arg2: i32, %arg3: memref<2x8xf32, #tpu.memory_space<smem>>) -> (i32, i32, i32) {
    %c0_i32 = arith.constant 0 : i32
    return %arg2, %arg0, %arg1 : i32, i32, i32
  }
  func.func @transform_1(%arg0: i32, %arg1: i32, %arg2: i32, %arg3: memref<2x8xf32, #tpu.memory_space<smem>>) -> (i32, i32, i32) {
    %c0_i32 = arith.constant 0 : i32
    return %arg2, %arg0, %arg1 : i32, i32, i32
  }
  func.func @transform_2(%arg0: i32, %arg1: i32, %arg2: i32, %arg3: memref<2x8xf32, #tpu.memory_space<smem>>) -> (i32, i32, i32) {
    %c0_i32 = arith.constant 0 : i32
    %c0_i32_0 = arith.constant 0 : i32
    return %c0_i32, %arg0, %arg1 : i32, i32, i32
  }
  func.func @transform_3(%arg0: i32, %arg1: i32, %arg2: i32, %arg3: memref<2x8xf32, #tpu.memory_space<smem>>) -> (i32, i32, i32) {
    %c0_i32 = arith.constant 0 : i32
    %c0_i32_0 = arith.constant 0 : i32
    return %c0_i32, %arg0, %arg1 : i32, i32, i32
  }
  func.func @transform_4(%arg0: i32, %arg1: i32, %arg2: i32, %arg3: memref<2x8xf32, #tpu.memory_space<smem>>) -> (i32, i32, i32) {
    %c0_i32 = arith.constant 0 : i32
    return %arg2, %arg0, %arg1 : i32, i32, i32
  }
  func.func @transform_5(%arg0: i32, %arg1: i32, %arg2: i32, %arg3: memref<2x8xf32, #tpu.memory_space<smem>>) -> (i32, i32, i32) {
    %c0_i32 = arith.constant 0 : i32
    return %arg2, %arg0, %arg1 : i32, i32, i32
  }
}

</mosaic_0001>

<llo_original>
// kernel: reverse.1
$region0: #{reverse.1}
  %s0 = inlined_call_operand.vmem [shape: f32[2,16,7], index: 0, kind: input, shape index: {}]
  %s1 = inlined_call_operand.vmem [shape: f32[2,16,7], index: 1, kind: output, shape index: {}]
  %v2 = vlaneseq
  %v3 = vsub.s32 6, %v2
  %4 = vset.pattern.permute.xlu0 %v3
  $region1: #{reverse.1} parent=0
    #allocation0 [shape = 'u8[16384]{0}', space=vmem, size = 0x4000, scoped, tag = 'operand span for operand 0']
    #allocation1 [shape = 'u8[16384]{0}', space=vmem, size = 0x4000, scoped, tag = 'operand span for operand 1']
    // Predicated region
    $region2: #{reverse.1} parent=1 // pred_check
      _
    $region3: #{reverse.1} parent=1 // pred_check_branch
      %6 = sbr.rel (0) target = $region5
    $region4: #{reverse.1} parent=1 // pred_region
      // Predicated region
      $region6: #{reverse.1} parent=4 // pred_check
        _
      $region7: #{reverse.1} parent=4 // pred_check_branch
        %8 = sbr.rel (0) target = $region9
      $region8: #{reverse.1} parent=4 // pred_region
        // Predicated region
        $region21: #{reverse.1} parent=8 // pred_check
          _
        $region22: #{reverse.1} parent=8 // pred_check_branch
          %30 = sbr.rel (0) target = $region24
        $region23: #{reverse.1} parent=8 // pred_region
          loop: start=0, step=1, limit=1
          $region25: #{reverse.1} parent=23 // loop_pre_header
            _
          $region26: #{reverse.1} parent=23 // loop_header
            %s32 = sphi 0, %s36
            %p33 = scmp.ge.s32.totalorder %s32, 1
            %s37 = sphi %s0, %s0
            %s38 = sphi [#allocation0], [#allocation0]
          $region27: #{reverse.1} parent=23 // loop_header_branch
            %35 = sbr.rel (%p33) target = $region31
          $region28: #{reverse.1} parent=23 // loop_body
            %v39 = vld [vmem:[%s37] sm:$0xff]
            %40 = vst [vmem:[%s38] sm:$0xff] %v39
            %v41 = vld [vmem:[%s37 + $0x8] sm:$0xff]
            %42 = vst [vmem:[%s38 + $0x8] sm:$0xff] %v41
            %v43 = vld [vmem:[%s37 + $0x10] sm:$0xff]
            %44 = vst [vmem:[%s38 + $0x10] sm:$0xff] %v43
            %v45 = vld [vmem:[%s37 + $0x18] sm:$0xff]
            %46 = vst [vmem:[%s38 + $0x18] sm:$0xff] %v45
          $region29: #{reverse.1} parent=23 // loop_footer
            %s36 = sadd.s32 1, %s32
          $region30: #{reverse.1} parent=23 // loop_footer_branch
            %31 = sbr.rel target = $region26
          $region31: #{reverse.1} parent=23 // loop_exit
            _
        $region24: #{reverse.1} parent=8 // pred_fallthru
          _
        // Predicated region
        $region32: #{reverse.1} parent=8 // pred_check
          _
        $region33: #{reverse.1} parent=8 // pred_check_branch
          %48 = sbr.rel target = $region35
        $region34: #{reverse.1} parent=8 // pred_region
          _
        $region35: #{reverse.1} parent=8 // pred_fallthru
          _
      $region9: #{reverse.1} parent=4 // pred_fallthru
        _
      // Predicated region
      $region10: #{reverse.1} parent=4 // pred_check
        _
      $region11: #{reverse.1} parent=4 // pred_check_branch
        %10 = sbr.rel target = $region13
      $region12: #{reverse.1} parent=4 // pred_region
        %s12 = ssub.s32 256, 1
        loop: start=0, step=1, limit=1
        $region14: #{reverse.1} parent=12 // loop_pre_header
          _
        $region15: #{reverse.1} parent=12 // loop_header
          %s14 = sphi 0, %s18
          %p15 = scmp.ge.s32.totalorder %s14, 1
          %s19 = sphi %s0, %s0
          %s20 = sphi [#allocation0], [#allocation0]
        $region16: #{reverse.1} parent=12 // loop_header_branch
          %17 = sbr.rel (%p15) target = $region20
        $region17: #{reverse.1} parent=12 // loop_body
          %v21 = vld [vmem:[%s19] sm:%s12]
          %22 = vst [vmem:[%s20] sm:%s12] %v21
          %v23 = vld [vmem:[%s19 + $0x8] sm:%s12]
          %24 = vst [vmem:[%s20 + $0x8] sm:%s12] %v23
          %v25 = vld [vmem:[%s19 + $0x10] sm:%s12]
          %26 = vst [vmem:[%s20 + $0x10] sm:%s12] %v25
          %v27 = vld [vmem:[%s19 + $0x18] sm:%s12]
          %28 = vst [vmem:[%s20 + $0x18] sm:%s12] %v27
        $region18: #{reverse.1} parent=12 // loop_footer
          %s18 = sadd.s32 1, %s14
        $region19: #{reverse.1} parent=12 // loop_footer_branch
          %13 = sbr.rel target = $region15
        $region20: #{reverse.1} parent=12 // loop_exit
          _
      $region13: #{reverse.1} parent=4 // pred_fallthru
        _
    $region5: #{reverse.1} parent=1 // pred_fallthru
      _
    %49 = vnop
    %v50 = vld [vmem:[#allocation0] sm:$0xff]
    %51 = vperm.xlu0 %4, %v50
    %v52 = vpop.permute.xlu0 %51
    %53 = vst [vmem:[#allocation1] sm:$0xff] %v52
    %s54 = scalar_lea.vmem [#allocation1], 8
    %s55 = scalar_lea.vmem [#allocation0], 8
    %v56 = vld [vmem:[%s55] sm:$0xff]
    %57 = vperm.xlu0 %4, %v56
    %v58 = vpop.permute.xlu0 %57
    %59 = vst [vmem:[%s54] sm:$0xff] %v58
    %s60 = scalar_lea.vmem [#allocation1], 16
    %s61 = scalar_lea.vmem [#allocation0], 16
    %v62 = vld [vmem:[%s61] sm:$0xff]
    %63 = vperm.xlu0 %4, %v62
    %v64 = vpop.permute.xlu0 %63
    %65 = vst [vmem:[%s60] sm:$0xff] %v64
    %s66 = scalar_lea.vmem %s60, 8 [#allocation1]
    %s67 = scalar_lea.vmem %s61, 8 [#allocation0]
    %v68 = vld [vmem:[%s67] sm:$0xff]
    %69 = vperm.xlu0 %4, %v68
    %v70 = vpop.permute.xlu0 %69
    %71 = vst [vmem:[%s66] sm:$0xff] %v70
    // Predicated region
    $region36: #{reverse.1} parent=1 // pred_check
      _
    $region37: #{reverse.1} parent=1 // pred_check_branch
      %73 = sbr.rel (0) target = $region39
    $region38: #{reverse.1} parent=1 // pred_region
      // Predicated region
      $region40: #{reverse.1} parent=38 // pred_check
        _
      $region41: #{reverse.1} parent=38 // pred_check_branch
        %75 = sbr.rel (0) target = $region43
      $region42: #{reverse.1} parent=38 // pred_region
        // Predicated region
        $region55: #{reverse.1} parent=42 // pred_check
          _
        $region56: #{reverse.1} parent=42 // pred_check_branch
          %97 = sbr.rel (0) target = $region58
        $region57: #{reverse.1} parent=42 // pred_region
          loop: start=0, step=1, limit=1
          $region59: #{reverse.1} parent=57 // loop_pre_header
            _
          $region60: #{reverse.1} parent=57 // loop_header
            %s99 = sphi 0, %s103
            %p100 = scmp.ge.s32.totalorder %s99, 1
            %s104 = sphi [#allocation1], [#allocation1]
            %s105 = sphi %s1, %s1
          $region61: #{reverse.1} parent=57 // loop_header_branch
            %102 = sbr.rel (%p100) target = $region65
          $region62: #{reverse.1} parent=57 // loop_body
            %v106 = vld [vmem:[%s104] sm:$0xff]
            %107 = vst [vmem:[%s105] sm:$0xff] %v106
            %v108 = vld [vmem:[%s104 + $0x8] sm:$0xff]
            %109 = vst [vmem:[%s105 + $0x8] sm:$0xff] %v108
            %v110 = vld [vmem:[%s104 + $0x10] sm:$0xff]
            %111 = vst [vmem:[%s105 + $0x10] sm:$0xff] %v110
            %v112 = vld [vmem:[%s104 + $0x18] sm:$0xff]
            %113 = vst [vmem:[%s105 + $0x18] sm:$0xff] %v112
          $region63: #{reverse.1} parent=57 // loop_footer
            %s103 = sadd.s32 1, %s99
          $region64: #{reverse.1} parent=57 // loop_footer_branch
            %98 = sbr.rel target = $region60
          $region65: #{reverse.1} parent=57 // loop_exit
            _
        $region58: #{reverse.1} parent=42 // pred_fallthru
          _
        // Predicated region
        $region66: #{reverse.1} parent=42 // pred_check
          _
        $region67: #{reverse.1} parent=42 // pred_check_branch
          %115 = sbr.rel target = $region69
        $region68: #{reverse.1} parent=42 // pred_region
          _
        $region69: #{reverse.1} parent=42 // pred_fallthru
          _
      $region43: #{reverse.1} parent=38 // pred_fallthru
        _
      // Predicated region
      $region44: #{reverse.1} parent=38 // pred_check
        _
      $region45: #{reverse.1} parent=38 // pred_check_branch
        %77 = sbr.rel target = $region47
      $region46: #{reverse.1} parent=38 // pred_region
        %s79 = ssub.s32 256, 1
        loop: start=0, step=1, limit=1
        $region48: #{reverse.1} parent=46 // loop_pre_header
          _
        $region49: #{reverse.1} parent=46 // loop_header
          %s81 = sphi 0, %s85
          %p82 = scmp.ge.s32.totalorder %s81, 1
          %s86 = sphi [#allocation1], [#allocation1]
          %s87 = sphi %s1, %s1
        $region50: #{reverse.1} parent=46 // loop_header_branch
          %84 = sbr.rel (%p82) target = $region54
        $region51: #{reverse.1} parent=46 // loop_body
          %v88 = vld [vmem:[%s86] sm:%s79]
          %89 = vst [vmem:[%s87] sm:%s79] %v88
          %v90 = vld [vmem:[%s86 + $0x8] sm:%s79]
          %91 = vst [vmem:[%s87 + $0x8] sm:%s79] %v90
          %v92 = vld [vmem:[%s86 + $0x10] sm:%s79]
          %93 = vst [vmem:[%s87 + $0x10] sm:%s79] %v92
          %v94 = vld [vmem:[%s86 + $0x18] sm:%s79]
          %95 = vst [vmem:[%s87 + $0x18] sm:%s79] %v94
        $region52: #{reverse.1} parent=46 // loop_footer
          %s85 = sadd.s32 1, %s81
        $region53: #{reverse.1} parent=46 // loop_footer_branch
          %80 = sbr.rel target = $region49
        $region54: #{reverse.1} parent=46 // loop_exit
          _
      $region47: #{reverse.1} parent=38 // pred_fallthru
        _
    $region39: #{reverse.1} parent=1 // pred_fallthru
      _
    %116 = vnop

// kernel: dgf_forward.2
$region0: #{dgf_forward.2}
  #allocation0 [shape = 'u32[]', space=smem, size = 0x4, offset = 0x4, fixed_abs, tag = 'smem constant byte address 0x4 - core index']
  #allocation1 [shape = 'u32[72,128]{1,0:T(1,128)}', space=vmem, size = 0x9000, scoped, tag = 'internal scratch']
  %s0 = inlined_call_operand.vmem [shape: f32[2,16], index: 0, kind: input, shape index: {}]
  %s1 = inlined_call_operand.vmem [shape: f32[16,4], index: 1, kind: input, shape index: {}]
  %s2 = inlined_call_operand.vmem [shape: f32[4,8], index: 2, kind: input, shape index: {}]
  %s3 = inlined_call_operand.vmem [shape: f32[1,8], index: 3, kind: input, shape index: {}]
  %s4 = inlined_call_operand.vmem [shape: f32[2,8], index: 4, kind: output, shape index: {}]
  %s5 = sld [smem:[#allocation0]]
  $region26: #{dgf_forward.2} parent=0
    _
  %s7 = ssub.s32 1, %s5
  %s8 = scalar_select 0, %s7, %s5
  // Predicated region
  $region2: #{dgf_forward.2} parent=0 // pred_check
    _
  $region3: #{dgf_forward.2} parent=0 // pred_check_branch
    %10 = sbr.rel (0) target = $region5
  $region4: #{dgf_forward.2} parent=0 // pred_region
    _
  $region5: #{dgf_forward.2} parent=0 // pred_fallthru
    _
  // Predicated region
  $region6: #{dgf_forward.2} parent=0 // pred_check
    _
  $region7: #{dgf_forward.2} parent=0 // pred_check_branch
    %12 = sbr.rel (0) target = $region9
  $region8: #{dgf_forward.2} parent=0 // pred_region
    _
  $region9: #{dgf_forward.2} parent=0 // pred_fallthru
    _
  // Predicated region
  $region10: #{dgf_forward.2} parent=0 // pred_check
    _
  $region11: #{dgf_forward.2} parent=0 // pred_check_branch
    %14 = sbr.rel (0) target = $region13
  $region12: #{dgf_forward.2} parent=0 // pred_region
    _
  $region13: #{dgf_forward.2} parent=0 // pred_fallthru
    _
  // Predicated region
  $region14: #{dgf_forward.2} parent=0 // pred_check
    _
  $region15: #{dgf_forward.2} parent=0 // pred_check_branch
    %16 = sbr.rel (0) target = $region17
  $region16: #{dgf_forward.2} parent=0 // pred_region
    _
  $region17: #{dgf_forward.2} parent=0 // pred_fallthru
    _
  %v17 = vld [vmem:[%s0] sm:$0x3]
  %v18 = vld [vmem:[%s1] sm:$0xff]
  %v19 = vld [vmem:[%s1 + $0x8] sm:$0xff]
  %vm20 = vcmask 130048
  %v22 = vsel %vm20, %v17, 0
  %24 = vmatpush.msra.mxu0 0.0
  %25 = vmatpush.msra.mxu0 0.0
  %26 = vmatpush.msra.mxu0 0.0
  %27 = vmatpush.msra.mxu0 0.0
  %28 = vmatpush.msra.mxu0 0.0
  %29 = vmatpush.msra.mxu0 0.0
  %30 = vmatpush.msra.mxu0 0.0
  %31 = vmatpush.msra.mxu0 0.0
  %32 = vmatpush.msra.mxu0 0.0
  %33 = vmatpush.msra.mxu0 0.0
  %34 = vmatpush.msra.mxu0 0.0
  %35 = vmatpush.msra.mxu0 0.0
  %36 = vmatpush.msra.mxu0 0.0
  %37 = vmatpush.msra.mxu0 0.0
  %38 = vmatpush.msra.mxu0 %v19
  %39 = vmatpush.msra.mxu0 %v18
  %40 = vmatmul.f32.gmra.mxu0 %v22
  %v41 = vpop.f32.mrf.mxu0
  %v42 = vadd.f32 0.0, %v41
  %43 = vdwg.mxu0
  %v44 = vmax.f32 %v42, 0.0
  %v45 = vld [vmem:[%s2] sm:$0xf]
  %v46 = vld [vmem:[%s3] sm:$0x1]
  %v48 = vperm.slane %v46, 0
  %vm50 = vcmask 31744
  %v52 = vsel %vm50, %v44, 0
  %vm54 = vcmask 1043456
  %v56 = vsel %vm54, %v45, 0
  %58 = vmatpush.msra.mxu0 0.0
  %59 = vmatpush.msra.mxu0 0.0
  %60 = vmatpush.msra.mxu0 0.0
  %61 = vmatpush.msra.mxu0 0.0
  %62 = vmatpush.msra.mxu0 0.0
  %63 = vmatpush.msra.mxu0 0.0
  %64 = vmatpush.msra.mxu0 0.0
  %65 = vmatpush.msra.mxu0 0.0
  %66 = vmatpush.msra.mxu0 0.0
  %67 = vmatpush.msra.mxu0 0.0
  %68 = vmatpush.msra.mxu0 0.0
  %69 = vmatpush.msra.mxu0 0.0
  %70 = vmatpush.msra.mxu0 0.0
  %71 = vmatpush.msra.mxu0 0.0
  %72 = vmatpush.msra.mxu0 0.0
  %73 = vmatpush.msra.mxu0 %v56
  %74 = vmatmul.f32.gmra.mxu0 %v52
  %v75 = vpop.f32.mrf.mxu0
  %v76 = vadd.f32 %v48, %v75
  %77 = vdwg.mxu0
  %v78 = vmul.f32 %v76, 0.029411765
  %vm79 = vcmask 58368
  %v80 = vsel %vm79, %v78, -inf
  %81 = vmax.xlane.f32.xlu0 %v80
  %v82 = vpop.xlane.xlu0 %81
  %v83 = vsub.f32 %v78, %v82
  %v84 = vmul.f32 %v83, 1.442695
  %v85 = vpow.pop %v84
  %v86 = vsel %vm79, %v85, 0.0
  %87 = vadd.xlane.f32.xlu0 %v86
  %v88 = vpop.xlane.xlu0 %87
  %v89 = vrcp.pop %v88
  %v90 = vmul.f32 %v88, %v89
  %v91 = vsub.f32 1.0, %v90
  %v92 = vmul.f32 %v89, %v91
  %v93 = vadd.f32 %v89, %v92
  %vm94 = vweird.f32 %v88
  %vm95 = vweird.f32 %v89
  %vm96 = vmor %vm94, %vm95
  %v97 = vsel %vm96, %v89, %v93
  %v98 = vand.u32 2147483647, %v88
  %vm99 = vcmp.eq.f32.partialorder %v98, 8.507059e+37
  %v100 = vand.u32 %v88, 2147483648
  %v101 = vor.u32 1.1754944e-38, %v100
  %v102 = vsel %vm99, %v101, %v97
  %v103 = vmul.f32 %v85, %v102
  %104 = vst.msk [vmem:[%s4] sm:$0x3] %vm79, %v103
  // Predicated region
  $region18: #{dgf_forward.2} parent=0 // pred_check
    _
  $region19: #{dgf_forward.2} parent=0 // pred_check_branch
    %106 = sbr.rel (0) target = $region21
  $region20: #{dgf_forward.2} parent=0 // pred_region
    _
  $region21: #{dgf_forward.2} parent=0 // pred_fallthru
    _
  // Predicated region
  $region22: #{dgf_forward.2} parent=0 // pred_check
    _
  $region23: #{dgf_forward.2} parent=0 // pred_check_branch
    %108 = sbr.rel (0) target = $region25
  $region24: #{dgf_forward.2} parent=0 // pred_region
    _
  $region25: #{dgf_forward.2} parent=0 // pred_fallthru
    _

// kernel: dgf_forward.3
$region0: #{dgf_forward.3}
  #allocation0 [shape = 'u32[]', space=smem, size = 0x4, offset = 0x4, fixed_abs, tag = 'smem constant byte address 0x4 - core index']
  #allocation1 [shape = 'u32[72,128]{1,0:T(1,128)}', space=vmem, size = 0x9000, scoped, tag = 'internal scratch']
  #allocation2 [shape = 's32[1]{0}', space=sflag, size = 0x4, scoped, tag = 'scoped memory for dgf_forward.3']
  #allocation3 [shape = 'u8[1024]{0}', space=smem, size = 0x400, scoped, tag = 'prefetched SMEM operand 0']
  %s0 = inlined_call_operand.vmem [shape: f32[2,8], index: 0, kind: input, shape index: {}]
  %s1 = inlined_call_operand.vmem [shape: f32[2,16,128], index: 1, kind: input, shape index: {}]
  %s2 = inlined_call_operand.vmem [shape: f32[2,16,128], index: 2, kind: input, shape index: {}]
  %s3 = inlined_call_operand.vmem [shape: bf16[8,16,128], index: 3, kind: input, shape index: {}]
  %s4 = inlined_call_operand.vmem [shape: bf16[8,16,128], index: 4, kind: input, shape index: {}]
  %s5 = inlined_call_operand.vmem [shape: f32[2,16,128], index: 5, kind: output, shape index: {0}]
  %s6 = inlined_call_operand.vmem [shape: f32[2,16,128], index: 6, kind: output, shape index: {1}]
  %7 = xla_tuple %s5, %s6
  %s8 = sld [smem:[#allocation0]]
  $region57: #{dgf_forward.3} parent=0
    _
  %s10 = ssub.s32 1, %s8
  %s11 = scalar_select 0, %s10, %s8
  %s13 = sshll.u32 %s0, 4
  %s14 = int_to_ptr.vmem [resolvable:$true] %s13
  %16 = dma.vmem_to_smem %s14, 32, [#allocation3], [#allocation2]
  %18 = dma.done [#allocation2], 32
  %19 = sfence
  loop: start=0, step=1, limit=4
  $region2: #{dgf_forward.3} parent=0 // loop_pre_header
    _
  $region3: #{dgf_forward.3} parent=0 // loop_header
    %s21 = sphi 0, %s25
    %p22 = scmp.ge.s32.totalorder %s21, 4
    %s28 = sphi 0, %s47
    %s29 = sphi 0, %s43
    %s30 = sphi 0, %s39
    %s31 = sphi 0, %s28
    %s32 = sphi 0, %s29
    %s33 = sphi 0, %s30
    %s34 = sphi 0, %s31
    %s35 = sphi 0, %s32
    %s36 = sphi 0, %s33
    %s54 = sphi 0, %s56
    %s57 = sphi 0, %s54
    %s58 = sphi 0, %s57
    %s74 = sphi 0, %s58
    %s84 = sphi 0, %s86
    %s87 = sphi 0, %s84
    %s88 = sphi 0, %s87
    %s104 = sphi 0, %s88
    %s112 = sphi 0, %s114
    %s115 = sphi 0, %s112
    %s116 = sphi 0, %s115
    %s132 = sphi 0, %s116
    %s140 = sphi 0, %s142
    %s143 = sphi 0, %s140
    %s144 = sphi 0, %s143
    %s160 = sphi 0, %s144
    %s170 = sphi 0, %s172
    %s173 = sphi 0, %s170
    %s174 = sphi 0, %s173
    %s190 = sphi 0, %s174
    %s200 = sphi 0, %s202
    %s203 = sphi 0, %s200
    %s204 = sphi 0, %s203
    %s220 = sphi 0, %s204
  $region4: #{dgf_forward.3} parent=0 // loop_header_branch
    %24 = sbr.rel (%p22) target = $region8
  $region5: #{dgf_forward.3} parent=0 // loop_body
    %s26 = ssub.s32 %s21, 1
    %s27 = ssub.s32 %s21, 2
    %s37 = sadd.s32 1, %s30
    %p38 = scmp.ge.s32.totalorder %s37, 2
    %s39 = scalar_select %p38, 0, %s37
    %s40 = sadd.s32 1, %s29
    %s41 = scalar_select %p38, %s40, %s29
    %p42 = scmp.ge.s32.totalorder %s41, 1
    %s43 = scalar_select %p42, 0, %s41
    %s44 = sadd.s32 1, %s28
    %s45 = scalar_select %p42, %s44, %s28
    %p46 = scmp.ge.s32.totalorder %s45, 1
    %s47 = scalar_select %p46, 0, %s45
    %s48 = ssub.s32 %s30, %s39
    %s49 = ssub.s32 %s28, %s47
    %s50 = sor.u32 %s48, %s49
    %s51 = ssub.s32 %s29, %s43
    %s52 = sor.u32 %s50, %s51
    %p53 = scmp.eq.s32.totalorder %s52, 0
    %s55 = sadd.s32 %s54, 1
    %s56 = scalar_select %p53, %s54, %s55
    %p59 = pneg %p53
    %p60 = scmp.eq.s32.totalorder %s21, 1
    %p61 = por %p59, %p60
    %p62 = scmp.ne.s32.totalorder %s54, %s57
    %p63 = scmp.eq.s32.totalorder %s21, 0
    %p64 = por %p62, %p63
    %p65 = scmp.ne.s32.totalorder %s54, %s57
    %p66 = scmp.eq.s32.totalorder %s26, 1
    %p67 = por %p65, %p66
    %p68 = scmp.ne.s32.totalorder %s57, %s58
    %p69 = scmp.eq.s32.totalorder %s26, 0
    %p70 = por %p68, %p69
    %p71 = scmp.ne.s32.totalorder %s57, %s58
    %p72 = scmp.eq.s32.totalorder %s27, 1
    %p73 = por %p71, %p72
    %p75 = scmp.ne.s32.totalorder %s58, %s74
    %p76 = scmp.eq.s32.totalorder %s27, 0
    %p77 = por %p75, %p76
    %s78 = ssub.s32 %s30, %s39
    %s79 = ssub.s32 %s28, %s47
    %s80 = sor.u32 %s78, %s79
    %s81 = ssub.s32 %s29, %s43
    %s82 = sor.u32 %s80, %s81
    %p83 = scmp.eq.s32.totalorder %s82, 0
    %s85 = sadd.s32 %s84, 1
    %s86 = scalar_select %p83, %s84, %s85
    %p89 = pneg %p83
    %p90 = scmp.eq.s32.totalorder %s21, 1
    %p91 = por %p89, %p90
    %p92 = scmp.ne.s32.totalorder %s84, %s87
    %p93 = scmp.eq.s32.totalorder %s21, 0
    %p94 = por %p92, %p93
    %p95 = scmp.ne.s32.totalorder %s84, %s87
    %p96 = scmp.eq.s32.totalorder %s26, 1
    %p97 = por %p95, %p96
    %p98 = scmp.ne.s32.totalorder %s87, %s88
    %p99 = scmp.eq.s32.totalorder %s26, 0
    %p100 = por %p98, %p99
    %p101 = scmp.ne.s32.totalorder %s87, %s88
    %p102 = scmp.eq.s32.totalorder %s27, 1
    %p103 = por %p101, %p102
    %p105 = scmp.ne.s32.totalorder %s88, %s104
    %p106 = scmp.eq.s32.totalorder %s27, 0
    %p107 = por %p105, %p106
    %s108 = ssub.s32 %s28, %s47
    %s109 = ssub.s32 %s29, %s43
    %s110 = sor.u32 %s108, %s109
    %p111 = scmp.eq.s32.totalorder %s110, 0
    %s113 = sadd.s32 %s112, 1
    %s114 = scalar_select %p111, %s112, %s113
    %p117 = pneg %p111
    %p118 = scmp.eq.s32.totalorder %s21, 1
    %p119 = por %p117, %p118
    %p120 = scmp.ne.s32.totalorder %s112, %s115
    %p121 = scmp.eq.s32.totalorder %s21, 0
    %p122 = por %p120, %p121
    %p123 = scmp.ne.s32.totalorder %s112, %s115
    %p124 = scmp.eq.s32.totalorder %s26, 1
    %p125 = por %p123, %p124
    %p126 = scmp.ne.s32.totalorder %s115, %s116
    %p127 = scmp.eq.s32.totalorder %s26, 0
    %p128 = por %p126, %p127
    %p129 = scmp.ne.s32.totalorder %s115, %s116
    %p130 = scmp.eq.s32.totalorder %s27, 1
    %p131 = por %p129, %p130
    %p133 = scmp.ne.s32.totalorder %s116, %s132
    %p134 = scmp.eq.s32.totalorder %s27, 0
    %p135 = por %p133, %p134
    %s136 = ssub.s32 %s28, %s47
    %s137 = ssub.s32 %s29, %s43
    %s138 = sor.u32 %s136, %s137
    %p139 = scmp.eq.s32.totalorder %s138, 0
    %s141 = sadd.s32 %s140, 1
    %s142 = scalar_select %p139, %s140, %s141
    %p145 = pneg %p139
    %p146 = scmp.eq.s32.totalorder %s21, 1
    %p147 = por %p145, %p146
    %p148 = scmp.ne.s32.totalorder %s140, %s143
    %p149 = scmp.eq.s32.totalorder %s21, 0
    %p150 = por %p148, %p149
    %p151 = scmp.ne.s32.totalorder %s140, %s143
    %p152 = scmp.eq.s32.totalorder %s26, 1
    %p153 = por %p151, %p152
    %p154 = scmp.ne.s32.totalorder %s143, %s144
    %p155 = scmp.eq.s32.totalorder %s26, 0
    %p156 = por %p154, %p155
    %p157 = scmp.ne.s32.totalorder %s143, %s144
    %p158 = scmp.eq.s32.totalorder %s27, 1
    %p159 = por %p157, %p158
    %p161 = scmp.ne.s32.totalorder %s144, %s160
    %p162 = scmp.eq.s32.totalorder %s27, 0
    %p163 = por %p161, %p162
    %s164 = ssub.s32 %s30, %s39
    %s165 = ssub.s32 %s28, %s47
    %s166 = sor.u32 %s164, %s165
    %s167 = ssub.s32 %s29, %s43
    %s168 = sor.u32 %s166, %s167
    %p169 = scmp.eq.s32.totalorder %s168, 0
    %s171 = sadd.s32 %s170, 1
    %s172 = scalar_select %p169, %s170, %s171
    %p175 = pneg %p169
    %p176 = scmp.eq.s32.totalorder %s21, 1
    %p177 = por %p175, %p176
    %p178 = scmp.ne.s32.totalorder %s170, %s173
    %p179 = scmp.eq.s32.totalorder %s21, 0
    %p180 = por %p178, %p179
    %p181 = scmp.ne.s32.totalorder %s170, %s173
    %p182 = scmp.eq.s32.totalorder %s26, 1
    %p183 = por %p181, %p182
    %p184 = scmp.ne.s32.totalorder %s173, %s174
    %p185 = scmp.eq.s32.totalorder %s26, 0
    %p186 = por %p184, %p185
    %p187 = scmp.ne.s32.totalorder %s173, %s174
    %p188 = scmp.eq.s32.totalorder %s27, 1
    %p189 = por %p187, %p188
    %p191 = scmp.ne.s32.totalorder %s174, %s190
    %p192 = scmp.eq.s32.totalorder %s27, 0
    %p193 = por %p191, %p192
    %s194 = ssub.s32 %s30, %s39
    %s195 = ssub.s32 %s28, %s47
    %s196 = sor.u32 %s194, %s195
    %s197 = ssub.s32 %s29, %s43
    %s198 = sor.u32 %s196, %s197
    %p199 = scmp.eq.s32.totalorder %s198, 0
    %s201 = sadd.s32 %s200, 1
    %s202 = scalar_select %p199, %s200, %s201
    %p205 = pneg %p199
    %p206 = scmp.eq.s32.totalorder %s21, 1
    %p207 = por %p205, %p206
    %p208 = scmp.ne.s32.totalorder %s200, %s203
    %p209 = scmp.eq.s32.totalorder %s21, 0
    %p210 = por %p208, %p209
    %p211 = scmp.ne.s32.totalorder %s200, %s203
    %p212 = scmp.eq.s32.totalorder %s26, 1
    %p213 = por %p211, %p212
    %p214 = scmp.ne.s32.totalorder %s203, %s204
    %p215 = scmp.eq.s32.totalorder %s26, 0
    %p216 = por %p214, %p215
    %p217 = scmp.ne.s32.totalorder %s203, %s204
    %p218 = scmp.eq.s32.totalorder %s27, 1
    %p219 = por %p217, %p218
    %p221 = scmp.ne.s32.totalorder %s204, %s220
    %p222 = scmp.eq.s32.totalorder %s27, 0
    %p223 = por %p221, %p222
    %p224 = scmp.le.s32.totalorder 1, %s21
    %p225 = scmp.lt.s32.totalorder %s21, 3
    %p226 = pnand %p224, %p225
    %p227 = pneg %p226
    // Predicated region
    $region9: #{dgf_forward.3} parent=5 // pred_check
      _
    $region10: #{dgf_forward.3} parent=5 // pred_check_branch
      %229 = sbr.rel (%p226) target = $region12
    $region11: #{dgf_forward.3} parent=5 // pred_region
      %s230 = ssub.s32 %s21, 1
      // Predicated region
      $region13: #{dgf_forward.3} parent=11 // pred_check
        %p231 = pneg %p128
      $region14: #{dgf_forward.3} parent=11 // pred_check_branch
        %233 = sbr.rel (%p231) target = $region16
      $region15: #{dgf_forward.3} parent=11 // pred_region
        %s234 = smul.u32 2, %s31
        %p235 = scmp.lt.s32.totalorder %s234, 1
        %s236 = scalar_select %p235, %s234, 1
        %p237 = scmp.lt.s32.totalorder %s32, 0
        %s238 = scalar_select %p237, %s32, 0
        %s239 = sadd.s32 %s238, %s236
        %s240 = smul.addr %s239, 4
        %s241 = scalar_lea.vmem %s3, %s240
        %s242 = smul.u32 2, %s31
      $region16: #{dgf_forward.3} parent=11 // pred_fallthru
        _
      // Predicated region
      $region17: #{dgf_forward.3} parent=11 // pred_check
        %p243 = pneg %p156
      $region18: #{dgf_forward.3} parent=11 // pred_check_branch
        %245 = sbr.rel (%p243) target = $region20
      $region19: #{dgf_forward.3} parent=11 // pred_region
        %s246 = smul.u32 2, %s31
        %p247 = scmp.lt.s32.totalorder %s246, 1
        %s248 = scalar_select %p247, %s246, 1
        %p249 = scmp.lt.s32.totalorder %s32, 0
        %s250 = scalar_select %p249, %s32, 0
        %s251 = sadd.s32 %s250, %s248
        %s252 = smul.addr %s251, 4
        %s253 = scalar_lea.vmem %s4, %s252
        %s254 = smul.u32 2, %s31
      $region20: #{dgf_forward.3} parent=11 // pred_fallthru
        _
    $region12: #{dgf_forward.3} parent=5 // pred_fallthru
      _
    %p255 = scmp.lt.s32.totalorder %s21, 2
    // Predicated region
    $region21: #{dgf_forward.3} parent=5 // pred_check
      %p256 = pneg %p255
    $region22: #{dgf_forward.3} parent=5 // pred_check_branch
      %258 = sbr.rel (%p256) target = $region24
    $region23: #{dgf_forward.3} parent=5 // pred_region
      // Predicated region
      $region25: #{dgf_forward.3} parent=23 // pred_check
        %p259 = pneg %p64
      $region26: #{dgf_forward.3} parent=23 // pred_check_branch
        %261 = sbr.rel (%p259) target = $region28
      $region27: #{dgf_forward.3} parent=23 // pred_region
        %s262 = smul.u32 2, %s28
        %p263 = scmp.lt.s32.totalorder %s30, 1
        %s264 = scalar_select %p263, %s30, 1
        %p265 = scmp.lt.s32.totalorder %s262, 1
        %s266 = scalar_select %p265, %s262, 1
        %p267 = scmp.lt.s32.totalorder %s29, 0
        %s268 = scalar_select %p267, %s29, 0
        %s269 = sadd.s32 %s268, %s266
        %s270 = smul.addr %s264, 2
        %s271 = sadd.s32 %s269, %s270
        %s272 = smul.addr %s271, 8
        %s273 = scalar_lea.vmem %s1, %s272
        %s274 = smul.u32 2, %s28
      $region28: #{dgf_forward.3} parent=23 // pred_fallthru
        _
      // Predicated region
      $region29: #{dgf_forward.3} parent=23 // pred_check
        %p275 = pneg %p94
      $region30: #{dgf_forward.3} parent=23 // pred_check_branch
        %277 = sbr.rel (%p275) target = $region32
      $region31: #{dgf_forward.3} parent=23 // pred_region
        %s278 = smul.u32 2, %s28
        %p279 = scmp.lt.s32.totalorder %s30, 1
        %s280 = scalar_select %p279, %s30, 1
        %p281 = scmp.lt.s32.totalorder %s278, 1
        %s282 = scalar_select %p281, %s278, 1
        %p283 = scmp.lt.s32.totalorder %s29, 0
        %s284 = scalar_select %p283, %s29, 0
        %s285 = sadd.s32 %s284, %s282
        %s286 = smul.addr %s280, 2
        %s287 = sadd.s32 %s285, %s286
        %s288 = smul.addr %s287, 8
        %s289 = scalar_lea.vmem %s2, %s288
        %s290 = smul.u32 2, %s28
      $region32: #{dgf_forward.3} parent=23 // pred_fallthru
        _
    $region24: #{dgf_forward.3} parent=5 // pred_fallthru
      _
    %p291 = scmp.le.s32.totalorder 1, %s21
    %p292 = scmp.lt.s32.totalorder %s21, 3
    %p293 = pnand %p291, %p292
    %p294 = pneg %p293
    // Predicated region
    $region33: #{dgf_forward.3} parent=5 // pred_check
      _
    $region34: #{dgf_forward.3} parent=5 // pred_check_branch
      %296 = sbr.rel (%p293) target = $region36
    $region35: #{dgf_forward.3} parent=5 // pred_region
      %s297 = ssub.s32 %s21, 1
      %s298 = smul.u32 2, %s31
      %p299 = scmp.lt.s32.totalorder %s33, 1
      %s300 = scalar_select %p299, %s33, 1
      %p301 = scmp.lt.s32.totalorder %s298, 1
      %s302 = scalar_select %p301, %s298, 1
      %p303 = scmp.lt.s32.totalorder %s32, 0
      %s304 = scalar_select %p303, %s32, 0
      %s305 = sadd.s32 %s304, %s302
      %s306 = smul.addr %s300, 2
      %s307 = sadd.s32 %s305, %s306
      %s308 = smul.addr %s307, 8
      %s309 = scalar_lea.vmem %s1, %s308
      %p310 = pneg %p70
      %p311 = pneg %p67
      %s312 = smul.u32 2, %s31
      %p313 = scmp.lt.s32.totalorder %s33, 1
      %s314 = scalar_select %p313, %s33, 1
      %p315 = scmp.lt.s32.totalorder %s312, 1
      %s316 = scalar_select %p315, %s312, 1
      %p317 = scmp.lt.s32.totalorder %s32, 0
      %s318 = scalar_select %p317, %s32, 0
      %s319 = sadd.s32 %s318, %s316
      %s320 = smul.addr %s314, 2
      %s321 = sadd.s32 %s319, %s320
      %s322 = smul.addr %s321, 8
      %s323 = scalar_lea.vmem %s2, %s322
      %p324 = pneg %p100
      %p325 = pneg %p97
      %s326 = smul.u32 2, %s31
      %p327 = scmp.lt.s32.totalorder %s326, 1
      %s328 = scalar_select %p327, %s326, 1
      %p329 = scmp.lt.s32.totalorder %s32, 0
      %s330 = scalar_select %p329, %s32, 0
      %s331 = sadd.s32 %s330, %s328
      %s332 = smul.addr %s331, 4
      %s333 = scalar_lea.vmem %s3, %s332
      %p334 = pneg %p128
      %p335 = pneg %p125
      %s336 = smul.u32 2, %s31
      %p337 = scmp.lt.s32.totalorder %s336, 1
      %s338 = scalar_select %p337, %s336, 1
      %p339 = scmp.lt.s32.totalorder %s32, 0
      %s340 = scalar_select %p339, %s32, 0
      %s341 = sadd.s32 %s340, %s338
      %s342 = smul.addr %s341, 4
      %s343 = scalar_lea.vmem %s4, %s342
      %p344 = pneg %p156
      %p345 = pneg %p153
      %p346 = pneg %p186
      %p347 = pneg %p183
      %s348 = smul.u32 2, %s31
      %p349 = scmp.lt.s32.totalorder %s33, 1
      %s350 = scalar_select %p349, %s33, 1
      %p351 = scmp.lt.s32.totalorder %s348, 1
      %s352 = scalar_select %p351, %s348, 1
      %p353 = scmp.lt.s32.totalorder %s32, 0
      %s354 = scalar_select %p353, %s32, 0
      %s355 = sadd.s32 %s354, %s352
      %s356 = smul.addr %s350, 2
      %s357 = sadd.s32 %s355, %s356
      %s358 = smul.addr %s357, 8
      %s359 = scalar_lea.vmem %s5, %s358
      %p360 = pneg %p216
      %p361 = pneg %p213
      %s362 = smul.u32 2, %s31
      %p363 = scmp.lt.s32.totalorder %s33, 1
      %s364 = scalar_select %p363, %s33, 1
      %p365 = scmp.lt.s32.totalorder %s362, 1
      %s366 = scalar_select %p365, %s362, 1
      %p367 = scmp.lt.s32.totalorder %s32, 0
      %s368 = scalar_select %p367, %s32, 0
      %s369 = sadd.s32 %s368, %s366
      %s370 = smul.addr %s364, 2
      %s371 = sadd.s32 %s369, %s370
      %s372 = smul.addr %s371, 8
      %s373 = scalar_lea.vmem %s6, %s372
      %s374 = smul.u32 2, %s31
      %p375 = scmp.lt.s32.totalorder %s33, 1
      %s376 = scalar_select %p375, %s33, 1
      %p377 = scmp.lt.s32.totalorder %s374, 1
      %s378 = scalar_select %p377, %s374, 1
      %p379 = scmp.lt.s32.totalorder %s32, 0
      %s380 = scalar_select %p379, %s32, 0
      %s381 = sadd.s32 %s380, %s378
      %s382 = smul.addr %s376, 2
      %s383 = sadd.s32 %s381, %s382
      %s384 = smul.addr %s383, 8
      %s385 = scalar_lea.vmem %s1, %s384
      %s386 = smul.u32 2, %s31
      %s387 = smul.u32 2, %s31
      %p388 = scmp.lt.s32.totalorder %s33, 1
      %s389 = scalar_select %p388, %s33, 1
      %p390 = scmp.lt.s32.totalorder %s387, 1
      %s391 = scalar_select %p390, %s387, 1
      %p392 = scmp.lt.s32.totalorder %s32, 0
      %s393 = scalar_select %p392, %s32, 0
      %s394 = sadd.s32 %s393, %s391
      %s395 = smul.addr %s389, 2
      %s396 = sadd.s32 %s394, %s395
      %s397 = smul.addr %s396, 8
      %s398 = scalar_lea.vmem %s2, %s397
      %s399 = smul.u32 2, %s31
      %s400 = smul.u32 2, %s31
      %p401 = scmp.lt.s32.totalorder %s400, 1
      %s402 = scalar_select %p401, %s400, 1
      %p403 = scmp.lt.s32.totalorder %s32, 0
      %s404 = scalar_select %p403, %s32, 0
      %s405 = sadd.s32 %s404, %s402
      %s406 = smul.addr %s405, 4
      %s407 = scalar_lea.vmem %s3, %s406
      %s408 = smul.u32 2, %s31
      %s409 = smul.u32 2, %s31
      %p410 = scmp.lt.s32.totalorder %s409, 1
      %s411 = scalar_select %p410, %s409, 1
      %p412 = scmp.lt.s32.totalorder %s32, 0
      %s413 = scalar_select %p412, %s32, 0
      %s414 = sadd.s32 %s413, %s411
      %s415 = smul.addr %s414, 4
      %s416 = scalar_lea.vmem %s4, %s415
      %s417 = smul.u32 2, %s31
      %s418 = smul.u32 2, %s31
      %p419 = scmp.lt.s32.totalorder %s33, 1
      %s420 = scalar_select %p419, %s33, 1
      %p421 = scmp.lt.s32.totalorder %s418, 1
      %s422 = scalar_select %p421, %s418, 1
      %p423 = scmp.lt.s32.totalorder %s32, 0
      %s424 = scalar_select %p423, %s32, 0
      %s425 = sadd.s32 %s424, %s422
      %s426 = smul.addr %s420, 2
      %s427 = sadd.s32 %s425, %s426
      %s428 = smul.addr %s427, 8
      %s429 = scalar_lea.vmem %s5, %s428
      %s430 = smul.u32 2, %s31
      %s431 = smul.u32 2, %s31
      %p432 = scmp.lt.s32.totalorder %s33, 1
      %s433 = scalar_select %p432, %s33, 1
      %p434 = scmp.lt.s32.totalorder %s431, 1
      %s435 = scalar_select %p434, %s431, 1
      %p436 = scmp.lt.s32.totalorder %s32, 0
      %s437 = scalar_select %p436, %s32, 0
      %s438 = sadd.s32 %s437, %s435
      %s439 = smul.addr %s433, 2
      %s440 = sadd.s32 %s438, %s439
      %s441 = smul.addr %s440, 8
      %s442 = scalar_lea.vmem %s6, %s441
      %s443 = smul.u32 2, %s31
      %v444 = vld [vmem:[%s385] sm:$0xff]
      %v445 = vld [vmem:[%s385 + $0x8] sm:$0xff]
      %v446 = vld [vmem:[%s398] sm:$0xff]
      %v447 = vld [vmem:[%s398 + $0x8] sm:$0xff]
      %s448 = smul.u32 %s33, 128
      %s449 = sld [smem:[#allocation3 + %s448]]
      %v450 = vld [vmem:[%s407] sm:$0xf]
      %v451 = vld [vmem:[%s407 + $0x4] sm:$0xf]
      %v452 = vunpack.c.l.bf16 %v450
      %v453 = vunpack.c.l.bf16 %v451
      %v454 = vstv %s449
      %v455 = vmul.f32 %v454, %v452
      %v456 = vmul.f32 %v454, %v453
      %v457 = vld [vmem:[%s416] sm:$0xf]
      %v458 = vld [vmem:[%s416 + $0x4] sm:$0xf]
      %v459 = vunpack.c.l.bf16 %v457
      %v460 = vunpack.c.l.bf16 %v458
      %v461 = vmul.f32 %v454, %v459
      %v462 = vmul.f32 %v454, %v460
      %s463 = sadd.s32 %s448, 1
      %s464 = sld [smem:[#allocation3 + %s463]]
      %s465 = scalar_lea.vmem %s407, 8
      %v466 = vld [vmem:[%s465] sm:$0xf]
      %v467 = vld [vmem:[%s465 + $0x4] sm:$0xf]
      %v468 = vunpack.c.l.bf16 %v466
      %v469 = vunpack.c.l.bf16 %v467
      %v470 = vstv %s464
      %v471 = vmul.f32 %v470, %v468
      %v472 = vmul.f32 %v470, %v469
      %v473 = vadd.f32 %v455, %v471
      %v474 = vadd.f32 %v456, %v472
      %s475 = scalar_lea.vmem %s416, 8
      %v476 = vld [vmem:[%s475] sm:$0xf]
      %v477 = vld [vmem:[%s475 + $0x4] sm:$0xf]
      %v478 = vunpack.c.l.bf16 %v476
      %v479 = vunpack.c.l.bf16 %v477
      %v480 = vmul.f32 %v470, %v478
      %v481 = vmul.f32 %v470, %v479
      %v482 = vadd.f32 %v461, %v480
      %v483 = vadd.f32 %v462, %v481
      %s484 = sadd.s32 %s448, 2
      %s485 = sld [smem:[#allocation3 + %s484]]
      %s486 = scalar_lea.vmem %s407, 16
      %v487 = vld [vmem:[%s486] sm:$0xf]
      %v488 = vld [vmem:[%s486 + $0x4] sm:$0xf]
      %v489 = vunpack.c.l.bf16 %v487
      %v490 = vunpack.c.l.bf16 %v488
      %v491 = vstv %s485
      %v492 = vmul.f32 %v491, %v489
      %v493 = vmul.f32 %v491, %v490
      %v494 = vadd.f32 %v473, %v492
      %v495 = vadd.f32 %v474, %v493
      %s496 = scalar_lea.vmem %s416, 16
      %v497 = vld [vmem:[%s496] sm:$0xf]
      %v498 = vld [vmem:[%s496 + $0x4] sm:$0xf]
      %v499 = vunpack.c.l.bf16 %v497
      %v500 = vunpack.c.l.bf16 %v498
      %v501 = vmul.f32 %v491, %v499
      %v502 = vmul.f32 %v491, %v500
      %v503 = vadd.f32 %v482, %v501
      %v504 = vadd.f32 %v483, %v502
      %s505 = sadd.s32 %s448, 3
      %s506 = sld [smem:[#allocation3 + %s505]]
      %s507 = scalar_lea.vmem %s407, 24
      %v508 = vld [vmem:[%s507] sm:$0xf]
      %v509 = vld [vmem:[%s507 + $0x4] sm:$0xf]
      %v510 = vunpack.c.l.bf16 %v508
      %v511 = vunpack.c.l.bf16 %v509
      %v512 = vstv %s506
      %v513 = vmul.f32 %v512, %v510
      %v514 = vmul.f32 %v512, %v511
      %v515 = vadd.f32 %v494, %v513
      %v516 = vadd.f32 %v495, %v514
      %s517 = scalar_lea.vmem %s416, 24
      %v518 = vld [vmem:[%s517] sm:$0xf]
      %v519 = vld [vmem:[%s517 + $0x4] sm:$0xf]
      %v520 = vunpack.c.l.bf16 %v518
      %v521 = vunpack.c.l.bf16 %v519
      %v522 = vmul.f32 %v512, %v520
      %v523 = vmul.f32 %v512, %v521
      %v524 = vadd.f32 %v503, %v522
      %v525 = vadd.f32 %v504, %v523
      %s526 = sadd.s32 %s448, 4
      %s527 = sld [smem:[#allocation3 + %s526]]
      %s528 = scalar_lea.vmem %s407, 32
      %v529 = vld [vmem:[%s528] sm:$0xf]
      %v530 = vld [vmem:[%s528 + $0x4] sm:$0xf]
      %v531 = vunpack.c.l.bf16 %v529
      %v532 = vunpack.c.l.bf16 %v530
      %v533 = vstv %s527
      %v534 = vmul.f32 %v533, %v531
      %v535 = vmul.f32 %v533, %v532
      %v536 = vadd.f32 %v515, %v534
      %v537 = vadd.f32 %v516, %v535
      %s538 = scalar_lea.vmem %s416, 32
      %v539 = vld [vmem:[%s538] sm:$0xf]
      %v540 = vld [vmem:[%s538 + $0x4] sm:$0xf]
      %v541 = vunpack.c.l.bf16 %v539
      %v542 = vunpack.c.l.bf16 %v540
      %v543 = vmul.f32 %v533, %v541
      %v544 = vmul.f32 %v533, %v542
      %v545 = vadd.f32 %v524, %v543
      %v546 = vadd.f32 %v525, %v544
      %s547 = sadd.s32 %s448, 5
      %s548 = sld [smem:[#allocation3 + %s547]]
      %s549 = scalar_lea.vmem %s407, 40
      %v550 = vld [vmem:[%s549] sm:$0xf]
      %v551 = vld [vmem:[%s549 + $0x4] sm:$0xf]
      %v552 = vunpack.c.l.bf16 %v550
      %v553 = vunpack.c.l.bf16 %v551
      %v554 = vstv %s548
      %v555 = vmul.f32 %v554, %v552
      %v556 = vmul.f32 %v554, %v553
      %v557 = vadd.f32 %v536, %v555
      %v558 = vadd.f32 %v537, %v556
      %s559 = scalar_lea.vmem %s416, 40
      %v560 = vld [vmem:[%s559] sm:$0xf]
      %v561 = vld [vmem:[%s559 + $0x4] sm:$0xf]
      %v562 = vunpack.c.l.bf16 %v560
      %v563 = vunpack.c.l.bf16 %v561
      %v564 = vmul.f32 %v554, %v562
      %v565 = vmul.f32 %v554, %v563
      %v566 = vadd.f32 %v545, %v564
      %v567 = vadd.f32 %v546, %v565
      %s568 = sadd.s32 %s448, 6
      %s569 = sld [smem:[#allocation3 + %s568]]
      %s570 = scalar_lea.vmem %s407, 48
      %v571 = vld [vmem:[%s570] sm:$0xf]
      %v572 = vld [vmem:[%s570 + $0x4] sm:$0xf]
      %v573 = vunpack.c.l.bf16 %v571
      %v574 = vunpack.c.l.bf16 %v572
      %v575 = vstv %s569
      %v576 = vmul.f32 %v575, %v573
      %v577 = vmul.f32 %v575, %v574
      %v578 = vadd.f32 %v557, %v576
      %v579 = vadd.f32 %v558, %v577
      %s580 = scalar_lea.vmem %s416, 48
      %v581 = vld [vmem:[%s580] sm:$0xf]
      %v582 = vld [vmem:[%s580 + $0x4] sm:$0xf]
      %v583 = vunpack.c.l.bf16 %v581
      %v584 = vunpack.c.l.bf16 %v582
      %v585 = vmul.f32 %v575, %v583
      %v586 = vmul.f32 %v575, %v584
      %v587 = vadd.f32 %v566, %v585
      %v588 = vadd.f32 %v567, %v586
      %s589 = sadd.s32 %s448, 7
      %s590 = sld [smem:[#allocation3 + %s589]]
      %s591 = scalar_lea.vmem %s407, 56
      %v592 = vld [vmem:[%s591] sm:$0xf]
      %v593 = vld [vmem:[%s591 + $0x4] sm:$0xf]
      %v594 = vunpack.c.l.bf16 %v592
      %v595 = vunpack.c.l.bf16 %v593
      %v596 = vstv %s590
      %v597 = vmul.f32 %v596, %v594
      %v598 = vmul.f32 %v596, %v595
      %v599 = vadd.f32 %v578, %v597
      %v600 = vadd.f32 %v579, %v598
      %s601 = scalar_lea.vmem %s416, 56
      %v602 = vld [vmem:[%s601] sm:$0xf]
      %v603 = vld [vmem:[%s601 + $0x4] sm:$0xf]
      %v604 = vunpack.c.l.bf16 %v602
      %v605 = vunpack.c.l.bf16 %v603
      %v606 = vmul.f32 %v596, %v604
      %v607 = vmul.f32 %v596, %v605
      %v608 = vadd.f32 %v587, %v606
      %v609 = vadd.f32 %v588, %v607
      %v610 = vmul.f32 %v444, %v599
      %v611 = vmul.f32 %v445, %v600
      %v612 = vmul.f32 %v446, %v608
      %v613 = vmul.f32 %v447, %v609
      %v614 = vsub.f32 %v610, %v612
      %v615 = vsub.f32 %v611, %v613
      %616 = vst [vmem:[%s429] sm:$0xff] %v614
      %617 = vst [vmem:[%s429 + $0x8] sm:$0xff] %v615
      %v618 = vmul.f32 %v444, %v608
      %v619 = vmul.f32 %v445, %v609
      %v620 = vmul.f32 %v446, %v599
      %v621 = vmul.f32 %v447, %v600
      %v622 = vadd.f32 %v618, %v620
      %v623 = vadd.f32 %v619, %v621
      %624 = vst [vmem:[%s442] sm:$0xff] %v622
      %625 = vst [vmem:[%s442 + $0x8] sm:$0xff] %v623
      %s626 = smul.u32 2, %s31
      %p627 = scmp.lt.s32.totalorder %s33, 1
      %s628 = scalar_select %p627, %s33, 1
      %p629 = scmp.lt.s32.totalorder %s626, 1
      %s630 = scalar_select %p629, %s626, 1
      %p631 = scmp.lt.s32.totalorder %s32, 0
      %s632 = scalar_select %p631, %s32, 0
      %s633 = sadd.s32 %s632, %s630
      %s634 = smul.addr %s628, 2
      %s635 = sadd.s32 %s633, %s634
      %s636 = smul.addr %s635, 8
      %s637 = scalar_lea.vmem %s5, %s636
      %s638 = smul.u32 2, %s31
      %p639 = scmp.lt.s32.totalorder %s33, 1
      %s640 = scalar_select %p639, %s33, 1
      %p641 = scmp.lt.s32.totalorder %s638, 1
      %s642 = scalar_select %p641, %s638, 1
      %p643 = scmp.lt.s32.totalorder %s32, 0
      %s644 = scalar_select %p643, %s32, 0
      %s645 = sadd.s32 %s644, %s642
      %s646 = smul.addr %s640, 2
      %s647 = sadd.s32 %s645, %s646
      %s648 = smul.addr %s647, 8
      %s649 = scalar_lea.vmem %s6, %s648
      // Predicated region
      $region37: #{dgf_forward.3} parent=35 // pred_check
        %p650 = pneg %p183
      $region38: #{dgf_forward.3} parent=35 // pred_check_branch
        %652 = sbr.rel (%p650) target = $region40
      $region39: #{dgf_forward.3} parent=35 // pred_region
        %s653 = smul.u32 2, %s31
      $region40: #{dgf_forward.3} parent=35 // pred_fallthru
        _
      // Predicated region
      $region41: #{dgf_forward.3} parent=35 // pred_check
        %p654 = pneg %p213
      $region42: #{dgf_forward.3} parent=35 // pred_check_branch
        %656 = sbr.rel (%p654) target = $region44
      $region43: #{dgf_forward.3} parent=35 // pred_region
        %s657 = smul.u32 2, %s31
      $region44: #{dgf_forward.3} parent=35 // pred_fallthru
        _
    $region36: #{dgf_forward.3} parent=5 // pred_fallthru
      _
    %p658 = scmp.le.s32.totalorder 2, %s21
    // Predicated region
    $region45: #{dgf_forward.3} parent=5 // pred_check
      %p659 = pneg %p658
    $region46: #{dgf_forward.3} parent=5 // pred_check_branch
      %661 = sbr.rel (%p659) target = $region48
    $region47: #{dgf_forward.3} parent=5 // pred_region
      %s662 = ssub.s32 %s21, 2
      // Predicated region
      $region49: #{dgf_forward.3} parent=47 // pred_check
        %p663 = pneg %p189
      $region50: #{dgf_forward.3} parent=47 // pred_check_branch
        %665 = sbr.rel (%p663) target = $region52
      $region51: #{dgf_forward.3} parent=47 // pred_region
        %s666 = smul.u32 2, %s34
        %p667 = scmp.lt.s32.totalorder %s36, 1
        %s668 = scalar_select %p667, %s36, 1
        %p669 = scmp.lt.s32.totalorder %s666, 1
        %s670 = scalar_select %p669, %s666, 1
        %p671 = scmp.lt.s32.totalorder %s35, 0
        %s672 = scalar_select %p671, %s35, 0
        %s673 = sadd.s32 %s672, %s670
        %s674 = smul.addr %s668, 2
        %s675 = sadd.s32 %s673, %s674
        %s676 = smul.addr %s675, 8
        %s677 = scalar_lea.vmem %s5, %s676
      $region52: #{dgf_forward.3} parent=47 // pred_fallthru
        _
      // Predicated region
      $region53: #{dgf_forward.3} parent=47 // pred_check
        %p678 = pneg %p219
      $region54: #{dgf_forward.3} parent=47 // pred_check_branch
        %680 = sbr.rel (%p678) target = $region56
      $region55: #{dgf_forward.3} parent=47 // pred_region
        %s681 = smul.u32 2, %s34
        %p682 = scmp.lt.s32.totalorder %s36, 1
        %s683 = scalar_select %p682, %s36, 1
        %p684 = scmp.lt.s32.totalorder %s681, 1
        %s685 = scalar_select %p684, %s681, 1
        %p686 = scmp.lt.s32.totalorder %s35, 0
        %s687 = scalar_select %p686, %s35, 0
        %s688 = sadd.s32 %s687, %s685
        %s689 = smul.addr %s683, 2
        %s690 = sadd.s32 %s688, %s689
        %s691 = smul.addr %s690, 8
        %s692 = scalar_lea.vmem %s6, %s691
      $region56: #{dgf_forward.3} parent=47 // pred_fallthru
        _
    $region48: #{dgf_forward.3} parent=5 // pred_fallthru
      _
  $region6: #{dgf_forward.3} parent=0 // loop_footer
    %s25 = sadd.s32 1, %s21
  $region7: #{dgf_forward.3} parent=0 // loop_footer_branch
    %20 = sbr.rel target = $region3
  $region8: #{dgf_forward.3} parent=0 // loop_exit
    _

</llo_original>
